<compile_context>
chip_gen: v5e
topology: v5e:2x2
jax: 0.10.0
libtpu: 0.0.40
codegen_flags: <defaults>
</compile_context>

<pallas_src>
import functools

import jax
import jax.numpy as jnp
from jax.experimental import pallas as pl
from jax.experimental.pallas import tpu as pltpu


def _round_up(v, m):
    return ((v + m - 1) // m) * m


def make_lstm1_kernel(num_layers, seq_len, h_pad, need_buf):
    T = seq_len
    HP = h_pad

    def kernel(*refs):
        # refs = [x_ref, (w_cat, b) * num_layers, w_fc, b_fc, out_ref, (buf_ref?)]
        x_ref = refs[0]
        idx = 1
        layer_refs = []
        for _ in range(num_layers):
            layer_refs.append((refs[idx], refs[idx + 1]))
            idx += 2
        wfc_ref = refs[idx]
        bfc_ref = refs[idx + 1]
        out_ref = refs[idx + 2]
        buf_ref = refs[idx + 3] if need_buf else None

        Bb = x_ref.shape[1]  # batch rows in this grid block (multiple of 8)

        h_final = None
        for l in range(num_layers):
            w_ref, b_ref = layer_refs[l]
            in_ref = x_ref if l == 0 else buf_ref
            write_out = l < num_layers - 1  # last layer only needs final h

            # Hoist the bias broadcast out of the timestep loop (JAX does not
            # CSE broadcast_in_dim inside loop bodies).
            b_bcast = jnp.broadcast_to(b_ref[...], (Bb, 4 * HP))

            def step(t, carry, in_ref=in_ref, w_ref=w_ref, b_bcast=b_bcast,
                     write_out=write_out):
                h, c = carry
                x_t = in_ref[t]                      # (Bb, Din_pad_l) VMEM load
                z = jnp.concatenate([x_t, h], axis=1)
                # Single fused MXU matmul per timestep (default precision,
                # f32 accumulation).
                gates = jnp.dot(z, w_ref[...],
                                preferred_element_type=jnp.float32) + b_bcast
                i_g = jax.nn.sigmoid(gates[:, 0 * HP:1 * HP])
                f_g = jax.nn.sigmoid(gates[:, 1 * HP:2 * HP])
                g_g = jnp.tanh(gates[:, 2 * HP:3 * HP])
                o_g = jax.nn.sigmoid(gates[:, 3 * HP:4 * HP])
                c_new = f_g * c + i_g * g_g
                h_new = o_g * jnp.tanh(c_new)
                if write_out:
                    buf_ref[t] = h_new               # hidden at t for next layer
                return (h_new, c_new)

            h0 = jnp.zeros((Bb, HP), jnp.float32)
            c0 = jnp.zeros((Bb, HP), jnp.float32)
            h_final, _ = jax.lax.fori_loop(0, T, step, (h0, c0))

        # fc(out[:, -1, :])
        out_ref[...] = (
            jnp.dot(h_final, wfc_ref[...], preferred_element_type=jnp.float32)
            + bfc_ref[...]
        )

    return kernel


@functools.partial(jax.jit,
                   static_argnames=("hidden_size", "num_layers", "output_size"))
def lstm1_forward(x, params, *, hidden_size, num_layers, output_size):
    """x: (B, T, input_size) batch-first, like the PyTorch module."""
    B, T, Din = x.shape
    H = hidden_size
    HP = _round_up(H, 128)            # gate-block / hidden lane padding
    DP = _round_up(Din, 128)          # input-feature lane padding
    OP = _round_up(output_size, 128)  # FC output lane padding

    # Batch blocking: pad to sublanes; split into 2 blocks (megacore-friendly)
    # when there is enough batch to share.
    if B > 8:
        n_blk = 2
        BP = _round_up(B, 16)
    else:
        n_blk = 1
        BP = _round_up(B, 8)
    B_blk = BP // n_blk

    # Time-major, zero-padded input (T, BP, DP).
    x_tm = jnp.transpose(x.astype(jnp.float32), (1, 0, 2))
    x_tm = jnp.pad(x_tm, ((0, 0), (0, BP - B), (0, DP - Din)))

    inputs = [x_tm]
    in_specs = [pl.BlockSpec((T, B_blk, DP), lambda b: (0, b, 0))]

    # Per-layer fused weight: rows = [x features (padded) | h (padded)],
    # cols = [i | f | g | o] gate blocks, each H_pad wide. Zero padding keeps
    # padded hidden lanes identically zero through the recurrence.
    for l in range(num_layers):
        w_ih, w_hh, b_ih, b_hh = params["lstm"][l]       # PyTorch layouts
        din_l = Din if l == 0 else H
        dp_l = DP if l == 0 else HP
        W = jnp.zeros((dp_l + HP, 4 * HP), jnp.float32)
        bvec = jnp.zeros((1, 4 * HP), jnp.float32)
        b_sum = b_ih + b_hh
        for g in range(4):
            W = W.at[:din_l, g * HP:g * HP + H].set(w_ih[g * H:(g + 1) * H, :].T)
            W = W.at[dp_l:dp_l + H, g * HP:g * HP + H].set(
                w_hh[g * H:(g + 1) * H, :].T)
            bvec = bvec.at[0, g * HP:g * HP + H].set(b_sum[g * H:(g + 1) * H])
        inputs += [W, bvec]
        in_specs += [
            pl.BlockSpec((dp_l + HP, 4 * HP), lambda b: (0, 0)),
            pl.BlockSpec((1, 4 * HP), lambda b: (0, 0)),
        ]

    # FC weights, lane-padded (padded h lanes are zero so zero rows are exact).
    Wfc = jnp.zeros((HP, OP), jnp.float32).at[:H, :output_size].set(
        params["fc_w"].T)
    bfc = jnp.zeros((1, OP), jnp.float32).at[0, :output_size].set(params["fc_b"])
    inputs += [Wfc, bfc]
    in_specs += [pl.BlockSpec((HP, OP), lambda b: (0, 0)),
                 pl.BlockSpec((1, OP), lambda b: (0, 0))]

    need_buf = num_layers > 1
    scratch = ([pltpu.VMEM((T, B_blk, HP), jnp.float32)] if need_buf else [])

    kernel = make_lstm1_kernel(num_layers, T, HP, need_buf)

    # Explicit VMEM budget: everything resident (x block + weights + scratch),
    # x2 for double-buffered inputs, + headroom, clamped <= 48 MiB (v7x).
    resident_bytes = 4 * (T * B_blk * DP + sum(int(a.size) for a in inputs[1:]))
    resident_bytes += 4 * (T * B_blk * HP if need_buf else 0)
    resident_bytes += 4 * B_blk * OP
    vmem_limit = int(min(max(2 * resident_bytes + (4 << 20), 16 << 20), 48 << 20))

    out = pl.pallas_call(
        kernel,
        out_shape=jax.ShapeDtypeStruct((BP, OP), jnp.float32),
        grid=(n_blk,),
        in_specs=in_specs,
        out_specs=pl.BlockSpec((B_blk, OP), lambda b: (b, 0)),
        scratch_shapes=scratch,
        compiler_params=pltpu.CompilerParams(
            dimension_semantics=("parallel",),
            vmem_limit_bytes=vmem_limit),
    )(*inputs)
    return out[:B, :output_size]


def init_params(key, input_size, hidden_size, num_layers, output_size):
    """Deterministic PyTorch-style uniform(-1/sqrt(H), 1/sqrt(H)) init."""
    k = 1.0 / float(hidden_size) ** 0.5
    keys = jax.random.split(key, num_layers * 4 + 2)
    ki = 0
    lstm = []
    for l in range(num_layers):
        in_sz = input_size if l == 0 else hidden_size
        w_ih = jax.random.uniform(keys[ki], (4 * hidden_size, in_sz),
                                  jnp.float32, -k, k); ki += 1
        w_hh = jax.random.uniform(keys[ki], (4 * hidden_size, hidden_size),
                                  jnp.float32, -k, k); ki += 1
        b_ih = jax.random.uniform(keys[ki], (4 * hidden_size,),
                                  jnp.float32, -k, k); ki += 1
        b_hh = jax.random.uniform(keys[ki], (4 * hidden_size,),
                                  jnp.float32, -k, k); ki += 1
        lstm.append((w_ih, w_hh, b_ih, b_hh))
    fc_w = jax.random.uniform(keys[ki], (output_size, hidden_size),
                              jnp.float32, -k, k); ki += 1
    fc_b = jax.random.uniform(keys[ki], (output_size,), jnp.float32, -k, k)
    return {"lstm": lstm, "fc_w": fc_w, "fc_b": fc_b}


def lstm1_reference(x, params, hidden_size, num_layers):
    """Pure-JAX f32 reference matching torch.nn.LSTM semantics."""
    B, T, _ = x.shape
    seq = x
    H = hidden_size
    for l in range(num_layers):
        w_ih, w_hh, b_ih, b_hh = params["lstm"][l]
        h = jnp.zeros((B, H), jnp.float32)
        c = jnp.zeros((B, H), jnp.float32)
        outs = []
        for t in range(T):
            gates = seq[:, t, :] @ w_ih.T + h @ w_hh.T + b_ih + b_hh
            i = jax.nn.sigmoid(gates[:, 0 * H:1 * H])
            f = jax.nn.sigmoid(gates[:, 1 * H:2 * H])
            g = jnp.tanh(gates[:, 2 * H:3 * H])
            o = jax.nn.sigmoid(gates[:, 3 * H:4 * H])
            c = f * c + i * g
            h = o * jnp.tanh(c)
            outs.append(h)
        seq = jnp.stack(outs, axis=1)
    return seq[:, -1, :] @ params["fc_w"].T + params["fc_b"]


if __name__ == "__main__":
    # Small, forward-consistent shapes: (batch, seq, input_size)
    batch, seq_len = 2, 8
    input_size, hidden_size, num_layers, output_size = 16, 32, 2, 4

    root = jax.random.PRNGKey(0)
    kx, kp = jax.random.split(root)
    x = jax.random.normal(kx, (batch, seq_len, input_size), jnp.float32)
    params = init_params(kp, input_size, hidden_size, num_layers, output_size)

    out = lstm1_forward(x, params, hidden_size=hidden_size,
                        num_layers=num_layers, output_size=output_size)
    out = jax.block_until_ready(out)

    ref = lstm1_reference(x, params, hidden_size, num_layers)
    assert out.shape == (batch, output_size)
    # Tolerance loosened slightly vs. the f32 reference because the kernel now
    # uses default-precision (bf16-pass) MXU matmuls with f32 accumulation.
    assert jnp.allclose(out, ref, atol=2e-2, rtol=2e-2), (out, ref)

    print("KERNEL_OK")
</pallas_src>

<mosaic_0001>
module attributes {stable_mosaic.version = 11 : i64} {
  func.func @kernel(%arg0: i32, %arg1: memref<8x8x128xf32, #tpu.memory_space<vmem>>, %arg2: memref<256x512xf32, #tpu.memory_space<vmem>>, %arg3: memref<1x512xf32, #tpu.memory_space<vmem>>, %arg4: memref<256x512xf32, #tpu.memory_space<vmem>>, %arg5: memref<1x512xf32, #tpu.memory_space<vmem>>, %arg6: memref<128x128xf32, #tpu.memory_space<vmem>>, %arg7: memref<1x128xf32, #tpu.memory_space<vmem>>, %arg8: memref<8x128xf32, #tpu.memory_space<vmem>>, %arg9: memref<8x8x128xf32, #tpu.memory_space<vmem>>) attributes {dimension_semantics = [#tpu.dimension_semantics<parallel>], iteration_bounds = array<i64: 1>, scalar_prefetch = 0 : i64, scratch_operands = 1 : i64, tpu.core_type = #tpu.core_type<tc>, window_params = [{transform_indices = @transform_0, window_bounds = array<i64: 8, 8, 128>}, {pipeline_mode = #tpu.pipeline_mode<synchronous>, transform_indices = @transform_1, window_bounds = array<i64: 256, 512>}, {pipeline_mode = #tpu.pipeline_mode<synchronous>, transform_indices = @transform_2, window_bounds = array<i64: 1, 512>}, {pipeline_mode = #tpu.pipeline_mode<synchronous>, transform_indices = @transform_3, window_bounds = array<i64: 256, 512>}, {pipeline_mode = #tpu.pipeline_mode<synchronous>, transform_indices = @transform_4, window_bounds = array<i64: 1, 512>}, {pipeline_mode = #tpu.pipeline_mode<synchronous>, transform_indices = @transform_5, window_bounds = array<i64: 128, 128>}, {pipeline_mode = #tpu.pipeline_mode<synchronous>, transform_indices = @transform_6, window_bounds = array<i64: 1, 128>}, {transform_indices = @transform_7, window_bounds = array<i64: 8, 128>}]} {
    %c0 = arith.constant 0 : index
    %c0_0 = arith.constant 0 : index
    %0 = vector.load %arg3[%c0, %c0_0] : memref<1x512xf32, #tpu.memory_space<vmem>>, vector<1x512xf32>
    %1 = vector.shape_cast %0 : vector<1x512xf32> to vector<1x512xf32>
    %2 = vector.broadcast %1 : vector<1x512xf32> to vector<8x512xf32>
    %cst = arith.constant 0.000000e+00 : f32
    %3 = vector.broadcast %cst : f32 to vector<8x128xf32>
    %cst_1 = arith.constant 0.000000e+00 : f32
    %4 = vector.broadcast %cst_1 : f32 to vector<8x128xf32>
    %c0_i32 = arith.constant 0 : i32
    %c8_i32 = arith.constant 8 : i32
    %5 = arith.addi %c0_i32, %c8_i32 : i32
    %c1_i32 = arith.constant 1 : i32
    %6:2 = scf.for %arg10 = %c0_i32 to %5 step %c1_i32 iter_args(%arg11 = %3, %arg12 = %4) -> (vector<8x128xf32>, vector<8x128xf32>)  : i32 {
      %20 = arith.index_cast %arg10 : i32 to index
      %c0_18 = arith.constant 0 : index
      %c0_19 = arith.constant 0 : index
      %21 = vector.load %arg1[%20, %c0_18, %c0_19] : memref<8x8x128xf32, #tpu.memory_space<vmem>>, vector<1x8x128xf32>
      %22 = vector.shape_cast %21 : vector<1x8x128xf32> to vector<8x128xf32>
      %23 = tpu.concatenate %22, %arg11 in 1 : vector<8x128xf32>, vector<8x128xf32> -> vector<8x256xf32>
      %c0_20 = arith.constant 0 : index
      %c0_21 = arith.constant 0 : index
      %24 = vector.load %arg2[%c0_20, %c0_21] : memref<256x512xf32, #tpu.memory_space<vmem>>, vector<256x512xf32>
      %cst_22 = arith.constant dense<0.000000e+00> : vector<8x512xf32>
      %25 = tpu.matmul %23, %24, %cst_22 {dimension_numbers = #tpu.dot_dimension_numbers<[1], [0], [0], [1], [0, 0, 1, 1], [], []>} : vector<8x256xf32>, vector<256x512xf32>, vector<8x512xf32> -> vector<8x512xf32>
      %26 = arith.addf %25, %2 : vector<8x512xf32>
      %27 = vector.extract_strided_slice %26 {offsets = [0, 0], sizes = [8, 128], strides = [1, 1]} : vector<8x512xf32> to vector<8x128xf32>
      %28 = arith.negf %27 : vector<8x128xf32>
      %29 = math.exp %28 : vector<8x128xf32>
      %cst_23 = arith.constant 1.000000e+00 : f32
      %30 = vector.broadcast %cst_23 : f32 to vector<8x128xf32>
      %31 = arith.addf %30, %29 : vector<8x128xf32>
      %32 = arith.divf %30, %31 : vector<8x128xf32>
      %33 = vector.extract_strided_slice %26 {offsets = [0, 128], sizes = [8, 128], strides = [1, 1]} : vector<8x512xf32> to vector<8x128xf32>
      %34 = arith.negf %33 : vector<8x128xf32>
      %35 = math.exp %34 : vector<8x128xf32>
      %cst_24 = arith.constant 1.000000e+00 : f32
      %36 = vector.broadcast %cst_24 : f32 to vector<8x128xf32>
      %37 = arith.addf %36, %35 : vector<8x128xf32>
      %38 = arith.divf %36, %37 : vector<8x128xf32>
      %39 = vector.extract_strided_slice %26 {offsets = [0, 256], sizes = [8, 128], strides = [1, 1]} : vector<8x512xf32> to vector<8x128xf32>
      %40 = math.tanh %39 : vector<8x128xf32>
      %41 = vector.extract_strided_slice %26 {offsets = [0, 384], sizes = [8, 128], strides = [1, 1]} : vector<8x512xf32> to vector<8x128xf32>
      %42 = arith.negf %41 : vector<8x128xf32>
      %43 = math.exp %42 : vector<8x128xf32>
      %cst_25 = arith.constant 1.000000e+00 : f32
      %44 = vector.broadcast %cst_25 : f32 to vector<8x128xf32>
      %45 = arith.addf %44, %43 : vector<8x128xf32>
      %46 = arith.divf %44, %45 : vector<8x128xf32>
      %47 = arith.mulf %38, %arg12 : vector<8x128xf32>
      %48 = arith.mulf %32, %40 : vector<8x128xf32>
      %49 = arith.addf %47, %48 : vector<8x128xf32>
      %50 = math.tanh %49 : vector<8x128xf32>
      %51 = arith.mulf %46, %50 : vector<8x128xf32>
      %52 = arith.index_cast %arg10 : i32 to index
      %c0_26 = arith.constant 0 : index
      %c0_27 = arith.constant 0 : index
      %53 = vector.load %arg9[%52, %c0_26, %c0_27] : memref<8x8x128xf32, #tpu.memory_space<vmem>>, vector<1x8x128xf32>
      %54 = vector.shape_cast %53 : vector<1x8x128xf32> to vector<8x128xf32>
      %55 = vector.shape_cast %51 : vector<8x128xf32> to vector<1x8x128xf32>
      tpu.vector_store %arg9[%52, %c0_26, %c0_27], %55 {strides = array<i32>} : memref<8x8x128xf32, #tpu.memory_space<vmem>>, vector<1x8x128xf32>,
      scf.yield %51, %49 : vector<8x128xf32>, vector<8x128xf32>
    }
    %c8_i32_2 = arith.constant 8 : i32
    %c0_3 = arith.constant 0 : index
    %c0_4 = arith.constant 0 : index
    %7 = vector.load %arg5[%c0_3, %c0_4] : memref<1x512xf32, #tpu.memory_space<vmem>>, vector<1x512xf32>
    %8 = vector.shape_cast %7 : vector<1x512xf32> to vector<1x512xf32>
    %9 = vector.broadcast %8 : vector<1x512xf32> to vector<8x512xf32>
    %cst_5 = arith.constant 0.000000e+00 : f32
    %10 = vector.broadcast %cst_5 : f32 to vector<8x128xf32>
    %cst_6 = arith.constant 0.000000e+00 : f32
    %11 = vector.broadcast %cst_6 : f32 to vector<8x128xf32>
    %c0_i32_7 = arith.constant 0 : i32
    %c8_i32_8 = arith.constant 8 : i32
    %12 = arith.addi %c0_i32_7, %c8_i32_8 : i32
    %c1_i32_9 = arith.constant 1 : i32
    %13:2 = scf.for %arg10 = %c0_i32_7 to %12 step %c1_i32_9 iter_args(%arg11 = %10, %arg12 = %11) -> (vector<8x128xf32>, vector<8x128xf32>)  : i32 {
      %20 = arith.index_cast %arg10 : i32 to index
      %c0_18 = arith.constant 0 : index
      %c0_19 = arith.constant 0 : index
      %21 = vector.load %arg9[%20, %c0_18, %c0_19] : memref<8x8x128xf32, #tpu.memory_space<vmem>>, vector<1x8x128xf32>
      %22 = vector.shape_cast %21 : vector<1x8x128xf32> to vector<8x128xf32>
      %23 = tpu.concatenate %22, %arg11 in 1 : vector<8x128xf32>, vector<8x128xf32> -> vector<8x256xf32>
      %c0_20 = arith.constant 0 : index
      %c0_21 = arith.constant 0 : index
      %24 = vector.load %arg4[%c0_20, %c0_21] : memref<256x512xf32, #tpu.memory_space<vmem>>, vector<256x512xf32>
      %cst_22 = arith.constant dense<0.000000e+00> : vector<8x512xf32>
      %25 = tpu.matmul %23, %24, %cst_22 {dimension_numbers = #tpu.dot_dimension_numbers<[1], [0], [0], [1], [0, 0, 1, 1], [], []>} : vector<8x256xf32>, vector<256x512xf32>, vector<8x512xf32> -> vector<8x512xf32>
      %26 = arith.addf %25, %9 : vector<8x512xf32>
      %27 = vector.extract_strided_slice %26 {offsets = [0, 0], sizes = [8, 128], strides = [1, 1]} : vector<8x512xf32> to vector<8x128xf32>
      %28 = arith.negf %27 : vector<8x128xf32>
      %29 = math.exp %28 : vector<8x128xf32>
      %cst_23 = arith.constant 1.000000e+00 : f32
      %30 = vector.broadcast %cst_23 : f32 to vector<8x128xf32>
      %31 = arith.addf %30, %29 : vector<8x128xf32>
      %32 = arith.divf %30, %31 : vector<8x128xf32>
      %33 = vector.extract_strided_slice %26 {offsets = [0, 128], sizes = [8, 128], strides = [1, 1]} : vector<8x512xf32> to vector<8x128xf32>
      %34 = arith.negf %33 : vector<8x128xf32>
      %35 = math.exp %34 : vector<8x128xf32>
      %cst_24 = arith.constant 1.000000e+00 : f32
      %36 = vector.broadcast %cst_24 : f32 to vector<8x128xf32>
      %37 = arith.addf %36, %35 : vector<8x128xf32>
      %38 = arith.divf %36, %37 : vector<8x128xf32>
      %39 = vector.extract_strided_slice %26 {offsets = [0, 256], sizes = [8, 128], strides = [1, 1]} : vector<8x512xf32> to vector<8x128xf32>
      %40 = math.tanh %39 : vector<8x128xf32>
      %41 = vector.extract_strided_slice %26 {offsets = [0, 384], sizes = [8, 128], strides = [1, 1]} : vector<8x512xf32> to vector<8x128xf32>
      %42 = arith.negf %41 : vector<8x128xf32>
      %43 = math.exp %42 : vector<8x128xf32>
      %cst_25 = arith.constant 1.000000e+00 : f32
      %44 = vector.broadcast %cst_25 : f32 to vector<8x128xf32>
      %45 = arith.addf %44, %43 : vector<8x128xf32>
      %46 = arith.divf %44, %45 : vector<8x128xf32>
      %47 = arith.mulf %38, %arg12 : vector<8x128xf32>
      %48 = arith.mulf %32, %40 : vector<8x128xf32>
      %49 = arith.addf %47, %48 : vector<8x128xf32>
      %50 = math.tanh %49 : vector<8x128xf32>
      %51 = arith.mulf %46, %50 : vector<8x128xf32>
      scf.yield %51, %49 : vector<8x128xf32>, vector<8x128xf32>
    }
    %c8_i32_10 = arith.constant 8 : i32
    %c0_11 = arith.constant 0 : index
    %c0_12 = arith.constant 0 : index
    %14 = vector.load %arg6[%c0_11, %c0_12] : memref<128x128xf32, #tpu.memory_space<vmem>>, vector<128x128xf32>
    %cst_13 = arith.constant dense<0.000000e+00> : vector<8x128xf32>
    %15 = tpu.matmul %13#0, %14, %cst_13 {dimension_numbers = #tpu.dot_dimension_numbers<[1], [0], [0], [1], [0, 0, 1, 1], [], []>} : vector<8x128xf32>, vector<128x128xf32>, vector<8x128xf32> -> vector<8x128xf32>
    %c0_14 = arith.constant 0 : index
    %c0_15 = arith.constant 0 : index
    %16 = vector.load %arg7[%c0_14, %c0_15] : memref<1x128xf32, #tpu.memory_space<vmem>>, vector<1x128xf32>
    %17 = vector.broadcast %16 : vector<1x128xf32> to vector<8x128xf32>
    %18 = arith.addf %15, %17 : vector<8x128xf32>
    %c0_16 = arith.constant 0 : index
    %c0_17 = arith.constant 0 : index
    %19 = vector.load %arg8[%c0_16, %c0_17] : memref<8x128xf32, #tpu.memory_space<vmem>>, vector<8x128xf32>
    tpu.vector_store %arg8[%c0_16, %c0_17], %18 {strides = array<i32>} : memref<8x128xf32, #tpu.memory_space<vmem>>, vector<8x128xf32>,
    return
  }
  func.func @transform_0(%arg0: i32) -> (i32, i32, i32) {
    %c0_i32 = arith.constant 0 : i32
    %c0_i32_0 = arith.constant 0 : i32
    %c0_i32_1 = arith.constant 0 : i32
    return %c0_i32, %arg0, %c0_i32_0 : i32, i32, i32
  }
  func.func @transform_1(%arg0: i32) -> (i32, i32) {
    %c0_i32 = arith.constant 0 : i32
    %c0_i32_0 = arith.constant 0 : i32
    %c0_i32_1 = arith.constant 0 : i32
    return %c0_i32, %c0_i32_0 : i32, i32
  }
  func.func @transform_2(%arg0: i32) -> (i32, i32) {
    %c0_i32 = arith.constant 0 : i32
    %c0_i32_0 = arith.constant 0 : i32
    %c0_i32_1 = arith.constant 0 : i32
    return %c0_i32, %c0_i32_0 : i32, i32
  }
  func.func @transform_3(%arg0: i32) -> (i32, i32) {
    %c0_i32 = arith.constant 0 : i32
    %c0_i32_0 = arith.constant 0 : i32
    %c0_i32_1 = arith.constant 0 : i32
    return %c0_i32, %c0_i32_0 : i32, i32
  }
  func.func @transform_4(%arg0: i32) -> (i32, i32) {
    %c0_i32 = arith.constant 0 : i32
    %c0_i32_0 = arith.constant 0 : i32
    %c0_i32_1 = arith.constant 0 : i32
    return %c0_i32, %c0_i32_0 : i32, i32
  }
  func.func @transform_5(%arg0: i32) -> (i32, i32) {
    %c0_i32 = arith.constant 0 : i32
    %c0_i32_0 = arith.constant 0 : i32
    %c0_i32_1 = arith.constant 0 : i32
    return %c0_i32, %c0_i32_0 : i32, i32
  }
  func.func @transform_6(%arg0: i32) -> (i32, i32) {
    %c0_i32 = arith.constant 0 : i32
    %c0_i32_0 = arith.constant 0 : i32
    %c0_i32_1 = arith.constant 0 : i32
    return %c0_i32, %c0_i32_0 : i32, i32
  }
  func.func @transform_7(%arg0: i32) -> (i32, i32) {
    %c0_i32 = arith.constant 0 : i32
    %c0_i32_0 = arith.constant 0 : i32
    return %arg0, %c0_i32 : i32, i32
  }
}

</mosaic_0001>

<llo_original>
// kernel: lstm1_forward.1
$region0: #{lstm1_forward.1}
  #allocation0 [shape = 'u32[]', space=smem, size = 0x4, offset = 0x4, fixed_abs, tag = 'smem constant byte address 0x4 - core index']
  #allocation1 [shape = 'u32[72,128]{1,0:T(1,128)}', space=vmem, size = 0x9000, scoped, tag = 'internal scratch']
  #allocation2 [shape = 'f32[8,8,128]{2,1,0:T(8,128)}', space=vmem, size = 0x8000, scoped, tag = 'scratch operand']
  %s0 = inlined_call_operand.vmem [shape: f32[8,8,128], index: 0, kind: input, shape index: {}]
  %s1 = inlined_call_operand.vmem [shape: f32[256,512], index: 1, kind: input, shape index: {}]
  %s2 = inlined_call_operand.vmem [shape: f32[1,512], index: 2, kind: input, shape index: {}]
  %s3 = inlined_call_operand.vmem [shape: f32[256,512], index: 3, kind: input, shape index: {}]
  %s4 = inlined_call_operand.vmem [shape: f32[1,512], index: 4, kind: input, shape index: {}]
  %s5 = inlined_call_operand.vmem [shape: f32[128,128], index: 5, kind: input, shape index: {}]
  %s6 = inlined_call_operand.vmem [shape: f32[1,128], index: 6, kind: input, shape index: {}]
  %s7 = inlined_call_operand.vmem [shape: f32[8,128], index: 7, kind: output, shape index: {}]
  %s8 = sld [smem:[#allocation0]]
  $region52: #{lstm1_forward.1} parent=0
    _
  %s10 = ssub.s32 1, %s8
  %s11 = scalar_select 0, %s10, %s8
  // Predicated region
  $region2: #{lstm1_forward.1} parent=0 // pred_check
    _
  $region3: #{lstm1_forward.1} parent=0 // pred_check_branch
    %13 = sbr.rel (0) target = $region5
  $region4: #{lstm1_forward.1} parent=0 // pred_region
    _
  $region5: #{lstm1_forward.1} parent=0 // pred_fallthru
    _
  // Predicated region
  $region6: #{lstm1_forward.1} parent=0 // pred_check
    _
  $region7: #{lstm1_forward.1} parent=0 // pred_check_branch
    %15 = sbr.rel (0) target = $region9
  $region8: #{lstm1_forward.1} parent=0 // pred_region
    _
  $region9: #{lstm1_forward.1} parent=0 // pred_fallthru
    _
  // Predicated region
  $region10: #{lstm1_forward.1} parent=0 // pred_check
    _
  $region11: #{lstm1_forward.1} parent=0 // pred_check_branch
    %17 = sbr.rel (0) target = $region13
  $region12: #{lstm1_forward.1} parent=0 // pred_region
    _
  $region13: #{lstm1_forward.1} parent=0 // pred_fallthru
    _
  // Predicated region
  $region14: #{lstm1_forward.1} parent=0 // pred_check
    _
  $region15: #{lstm1_forward.1} parent=0 // pred_check_branch
    %19 = sbr.rel (0) target = $region17
  $region16: #{lstm1_forward.1} parent=0 // pred_region
    _
  $region17: #{lstm1_forward.1} parent=0 // pred_fallthru
    _
  // Predicated region
  $region18: #{lstm1_forward.1} parent=0 // pred_check
    _
  $region19: #{lstm1_forward.1} parent=0 // pred_check_branch
    %21 = sbr.rel (0) target = $region21
  $region20: #{lstm1_forward.1} parent=0 // pred_region
    _
  $region21: #{lstm1_forward.1} parent=0 // pred_fallthru
    _
  // Predicated region
  $region22: #{lstm1_forward.1} parent=0 // pred_check
    _
  $region23: #{lstm1_forward.1} parent=0 // pred_check_branch
    %23 = sbr.rel (0) target = $region25
  $region24: #{lstm1_forward.1} parent=0 // pred_region
    _
  $region25: #{lstm1_forward.1} parent=0 // pred_fallthru
    _
  // Predicated region
  $region26: #{lstm1_forward.1} parent=0 // pred_check
    _
  $region27: #{lstm1_forward.1} parent=0 // pred_check_branch
    %25 = sbr.rel (0) target = $region29
  $region28: #{lstm1_forward.1} parent=0 // pred_region
    _
  $region29: #{lstm1_forward.1} parent=0 // pred_fallthru
    _
  %v26 = vld [vmem:[%s2] sm:$0xf]
  %v28 = vperm.slane %v26, 0
  %v29 = vperm.slane %v26, 1
  %v30 = vperm.slane %v26, 2
  %v31 = vperm.slane %v26, 3
  loop: start=0, step=1, limit=8
  $region30: #{lstm1_forward.1} parent=0 // loop_pre_header
    _
  $region31: #{lstm1_forward.1} parent=0 // loop_header
    %s37 = sphi 0, %s41
    %p38 = scmp.ge.s32.totalorder %s37, 8
    %v42 = vphi 0.0, %v397
    %v43 = vphi 0.0, %v395
  $region32: #{lstm1_forward.1} parent=0 // loop_header_branch
    %40 = sbr.rel (%p38) target = $region36
  $region33: #{lstm1_forward.1} parent=0 // loop_body
    %s44 = smul.u32 %s37, 8
    %s45 = scalar_lea.vmem %s0, %s44
    %v46 = vld [vmem:[%s45] sm:$0xff]
    %v47 = vld [vmem:[%s1] sm:$0xff]
    %v48 = vld [vmem:[%s1 + $0x8] sm:$0xff]
    %v49 = vld [vmem:[%s1 + $0x10] sm:$0xff]
    %v50 = vld [vmem:[%s1 + $0x18] sm:$0xff]
    %v51 = vld [vmem:[%s1 + $0x20] sm:$0xff]
    %v52 = vld [vmem:[%s1 + $0x28] sm:$0xff]
    %v53 = vld [vmem:[%s1 + $0x30] sm:$0xff]
    %v54 = vld [vmem:[%s1 + $0x38] sm:$0xff]
    %v55 = vld [vmem:[%s1 + $0x40] sm:$0xff]
    %v56 = vld [vmem:[%s1 + $0x48] sm:$0xff]
    %v57 = vld [vmem:[%s1 + $0x50] sm:$0xff]
    %v58 = vld [vmem:[%s1 + $0x58] sm:$0xff]
    %v59 = vld [vmem:[%s1 + $0x60] sm:$0xff]
    %v60 = vld [vmem:[%s1 + $0x68] sm:$0xff]
    %v61 = vld [vmem:[%s1 + $0x70] sm:$0xff]
    %v62 = vld [vmem:[%s1 + $0x78] sm:$0xff]
    %v63 = vld [vmem:[%s1 + $0x80] sm:$0xff]
    %v64 = vld [vmem:[%s1 + $0x88] sm:$0xff]
    %v65 = vld [vmem:[%s1 + $0x90] sm:$0xff]
    %v66 = vld [vmem:[%s1 + $0x98] sm:$0xff]
    %v67 = vld [vmem:[%s1 + $0xa0] sm:$0xff]
    %v68 = vld [vmem:[%s1 + $0xa8] sm:$0xff]
    %v69 = vld [vmem:[%s1 + $0xb0] sm:$0xff]
    %v70 = vld [vmem:[%s1 + $0xb8] sm:$0xff]
    %v71 = vld [vmem:[%s1 + $0xc0] sm:$0xff]
    %v72 = vld [vmem:[%s1 + $0xc8] sm:$0xff]
    %v73 = vld [vmem:[%s1 + $0xd0] sm:$0xff]
    %v74 = vld [vmem:[%s1 + $0xd8] sm:$0xff]
    %v75 = vld [vmem:[%s1 + $0xe0] sm:$0xff]
    %v76 = vld [vmem:[%s1 + $0xe8] sm:$0xff]
    %v77 = vld [vmem:[%s1 + $0xf0] sm:$0xff]
    %v78 = vld [vmem:[%s1 + $0xf8] sm:$0xff]
    %v79 = vld [vmem:[%s1 + $0x100] sm:$0xff]
    %v80 = vld [vmem:[%s1 + $0x108] sm:$0xff]
    %v81 = vld [vmem:[%s1 + $0x110] sm:$0xff]
    %v82 = vld [vmem:[%s1 + $0x118] sm:$0xff]
    %v83 = vld [vmem:[%s1 + $0x120] sm:$0xff]
    %v84 = vld [vmem:[%s1 + $0x128] sm:$0xff]
    %v85 = vld [vmem:[%s1 + $0x130] sm:$0xff]
    %v86 = vld [vmem:[%s1 + $0x138] sm:$0xff]
    %v87 = vld [vmem:[%s1 + $0x140] sm:$0xff]
    %v88 = vld [vmem:[%s1 + $0x148] sm:$0xff]
    %v89 = vld [vmem:[%s1 + $0x150] sm:$0xff]
    %v90 = vld [vmem:[%s1 + $0x158] sm:$0xff]
    %v91 = vld [vmem:[%s1 + $0x160] sm:$0xff]
    %v92 = vld [vmem:[%s1 + $0x168] sm:$0xff]
    %v93 = vld [vmem:[%s1 + $0x170] sm:$0xff]
    %v94 = vld [vmem:[%s1 + $0x178] sm:$0xff]
    %v95 = vld [vmem:[%s1 + $0x180] sm:$0xff]
    %v96 = vld [vmem:[%s1 + $0x188] sm:$0xff]
    %v97 = vld [vmem:[%s1 + $0x190] sm:$0xff]
    %v98 = vld [vmem:[%s1 + $0x198] sm:$0xff]
    %v99 = vld [vmem:[%s1 + $0x1a0] sm:$0xff]
    %v100 = vld [vmem:[%s1 + $0x1a8] sm:$0xff]
    %v101 = vld [vmem:[%s1 + $0x1b0] sm:$0xff]
    %v102 = vld [vmem:[%s1 + $0x1b8] sm:$0xff]
    %v103 = vld [vmem:[%s1 + $0x1c0] sm:$0xff]
    %v104 = vld [vmem:[%s1 + $0x1c8] sm:$0xff]
    %v105 = vld [vmem:[%s1 + $0x1d0] sm:$0xff]
    %v106 = vld [vmem:[%s1 + $0x1d8] sm:$0xff]
    %v107 = vld [vmem:[%s1 + $0x1e0] sm:$0xff]
    %v108 = vld [vmem:[%s1 + $0x1e8] sm:$0xff]
    %v109 = vld [vmem:[%s1 + $0x1f0] sm:$0xff]
    %v110 = vld [vmem:[%s1 + $0x1f8] sm:$0xff]
    %v111 = vld [vmem:[%s1 + $0x200] sm:$0xff]
    %v112 = vld [vmem:[%s1 + $0x208] sm:$0xff]
    %v113 = vld [vmem:[%s1 + $0x210] sm:$0xff]
    %v114 = vld [vmem:[%s1 + $0x218] sm:$0xff]
    %v115 = vld [vmem:[%s1 + $0x220] sm:$0xff]
    %v116 = vld [vmem:[%s1 + $0x228] sm:$0xff]
    %v117 = vld [vmem:[%s1 + $0x230] sm:$0xff]
    %v118 = vld [vmem:[%s1 + $0x238] sm:$0xff]
    %v119 = vld [vmem:[%s1 + $0x240] sm:$0xff]
    %v120 = vld [vmem:[%s1 + $0x248] sm:$0xff]
    %v121 = vld [vmem:[%s1 + $0x250] sm:$0xff]
    %v122 = vld [vmem:[%s1 + $0x258] sm:$0xff]
    %v123 = vld [vmem:[%s1 + $0x260] sm:$0xff]
    %v124 = vld [vmem:[%s1 + $0x268] sm:$0xff]
    %v125 = vld [vmem:[%s1 + $0x270] sm:$0xff]
    %v126 = vld [vmem:[%s1 + $0x278] sm:$0xff]
    %v127 = vld [vmem:[%s1 + $0x280] sm:$0xff]
    %v128 = vld [vmem:[%s1 + $0x288] sm:$0xff]
    %v129 = vld [vmem:[%s1 + $0x290] sm:$0xff]
    %v130 = vld [vmem:[%s1 + $0x298] sm:$0xff]
    %v131 = vld [vmem:[%s1 + $0x2a0] sm:$0xff]
    %v132 = vld [vmem:[%s1 + $0x2a8] sm:$0xff]
    %v133 = vld [vmem:[%s1 + $0x2b0] sm:$0xff]
    %v134 = vld [vmem:[%s1 + $0x2b8] sm:$0xff]
    %v135 = vld [vmem:[%s1 + $0x2c0] sm:$0xff]
    %v136 = vld [vmem:[%s1 + $0x2c8] sm:$0xff]
    %v137 = vld [vmem:[%s1 + $0x2d0] sm:$0xff]
    %v138 = vld [vmem:[%s1 + $0x2d8] sm:$0xff]
    %v139 = vld [vmem:[%s1 + $0x2e0] sm:$0xff]
    %v140 = vld [vmem:[%s1 + $0x2e8] sm:$0xff]
    %v141 = vld [vmem:[%s1 + $0x2f0] sm:$0xff]
    %v142 = vld [vmem:[%s1 + $0x2f8] sm:$0xff]
    %v143 = vld [vmem:[%s1 + $0x300] sm:$0xff]
    %v144 = vld [vmem:[%s1 + $0x308] sm:$0xff]
    %v145 = vld [vmem:[%s1 + $0x310] sm:$0xff]
    %v146 = vld [vmem:[%s1 + $0x318] sm:$0xff]
    %v147 = vld [vmem:[%s1 + $0x320] sm:$0xff]
    %v148 = vld [vmem:[%s1 + $0x328] sm:$0xff]
    %v149 = vld [vmem:[%s1 + $0x330] sm:$0xff]
    %v150 = vld [vmem:[%s1 + $0x338] sm:$0xff]
    %v151 = vld [vmem:[%s1 + $0x340] sm:$0xff]
    %v152 = vld [vmem:[%s1 + $0x348] sm:$0xff]
    %v153 = vld [vmem:[%s1 + $0x350] sm:$0xff]
    %v154 = vld [vmem:[%s1 + $0x358] sm:$0xff]
    %v155 = vld [vmem:[%s1 + $0x360] sm:$0xff]
    %v156 = vld [vmem:[%s1 + $0x368] sm:$0xff]
    %v157 = vld [vmem:[%s1 + $0x370] sm:$0xff]
    %v158 = vld [vmem:[%s1 + $0x378] sm:$0xff]
    %v159 = vld [vmem:[%s1 + $0x380] sm:$0xff]
    %v160 = vld [vmem:[%s1 + $0x388] sm:$0xff]
    %v161 = vld [vmem:[%s1 + $0x390] sm:$0xff]
    %v162 = vld [vmem:[%s1 + $0x398] sm:$0xff]
    %v163 = vld [vmem:[%s1 + $0x3a0] sm:$0xff]
    %v164 = vld [vmem:[%s1 + $0x3a8] sm:$0xff]
    %v165 = vld [vmem:[%s1 + $0x3b0] sm:$0xff]
    %v166 = vld [vmem:[%s1 + $0x3b8] sm:$0xff]
    %v167 = vld [vmem:[%s1 + $0x3c0] sm:$0xff]
    %v168 = vld [vmem:[%s1 + $0x3c8] sm:$0xff]
    %v169 = vld [vmem:[%s1 + $0x3d0] sm:$0xff]
    %v170 = vld [vmem:[%s1 + $0x3d8] sm:$0xff]
    %v171 = vld [vmem:[%s1 + $0x3e0] sm:$0xff]
    %v172 = vld [vmem:[%s1 + $0x3e8] sm:$0xff]
    %v173 = vld [vmem:[%s1 + $0x3f0] sm:$0xff]
    %v174 = vld [vmem:[%s1 + $0x3f8] sm:$0xff]
    %175 = vmatpush.msra.mxu0 %v107
    %176 = vmatpush.msra.mxu0 %v103
    %177 = vmatpush.msra.mxu0 %v99
    %178 = vmatpush.msra.mxu0 %v95
    %179 = vmatpush.msra.mxu0 %v91
    %180 = vmatpush.msra.mxu0 %v87
    %181 = vmatpush.msra.mxu0 %v83
    %182 = vmatpush.msra.mxu0 %v79
    %183 = vmatpush.msra.mxu0 %v75
    %184 = vmatpush.msra.mxu0 %v71
    %185 = vmatpush.msra.mxu0 %v67
    %186 = vmatpush.msra.mxu0 %v63
    %187 = vmatpush.msra.mxu0 %v59
    %188 = vmatpush.msra.mxu0 %v55
    %189 = vmatpush.msra.mxu0 %v51
    %190 = vmatpush.msra.mxu0 %v47
    %191 = vmatmul.f32.gmra.mxu0 %v46
    %v192 = vpop.f32.mrf.mxu0
    %v193 = vadd.f32 %v28, %v192
    %194 = vdwg.mxu0
    %195 = vmatpush.msra.mxu0 %v171
    %196 = vmatpush.msra.mxu0 %v167
    %197 = vmatpush.msra.mxu0 %v163
    %198 = vmatpush.msra.mxu0 %v159
    %199 = vmatpush.msra.mxu0 %v155
    %200 = vmatpush.msra.mxu0 %v151
    %201 = vmatpush.msra.mxu0 %v147
    %202 = vmatpush.msra.mxu0 %v143
    %203 = vmatpush.msra.mxu0 %v139
    %204 = vmatpush.msra.mxu0 %v135
    %205 = vmatpush.msra.mxu0 %v131
    %206 = vmatpush.msra.mxu0 %v127
    %207 = vmatpush.msra.mxu0 %v123
    %208 = vmatpush.msra.mxu0 %v119
    %209 = vmatpush.msra.mxu0 %v115
    %210 = vmatpush.msra.mxu0 %v111
    %211 = vmatmul.f32.gmra.mxu0 %v42
    %v212 = vpop.f32.mrf.mxu0
    %v213 = vadd.f32 %v193, %v212
    %214 = vdwg.mxu0
    %215 = vmatpush.msra.mxu0 %v108
    %216 = vmatpush.msra.mxu0 %v104
    %217 = vmatpush.msra.mxu0 %v100
    %218 = vmatpush.msra.mxu0 %v96
    %219 = vmatpush.msra.mxu0 %v92
    %220 = vmatpush.msra.mxu0 %v88
    %221 = vmatpush.msra.mxu0 %v84
    %222 = vmatpush.msra.mxu0 %v80
    %223 = vmatpush.msra.mxu0 %v76
    %224 = vmatpush.msra.mxu0 %v72
    %225 = vmatpush.msra.mxu0 %v68
    %226 = vmatpush.msra.mxu0 %v64
    %227 = vmatpush.msra.mxu0 %v60
    %228 = vmatpush.msra.mxu0 %v56
    %229 = vmatpush.msra.mxu0 %v52
    %230 = vmatpush.msra.mxu0 %v48
    %231 = vmatmul.f32.gmra.mxu0 %v46
    %v232 = vpop.f32.mrf.mxu0
    %v233 = vadd.f32 %v29, %v232
    %234 = vdwg.mxu0
    %235 = vmatpush.msra.mxu0 %v172
    %236 = vmatpush.msra.mxu0 %v168
    %237 = vmatpush.msra.mxu0 %v164
    %238 = vmatpush.msra.mxu0 %v160
    %239 = vmatpush.msra.mxu0 %v156
    %240 = vmatpush.msra.mxu0 %v152
    %241 = vmatpush.msra.mxu0 %v148
    %242 = vmatpush.msra.mxu0 %v144
    %243 = vmatpush.msra.mxu0 %v140
    %244 = vmatpush.msra.mxu0 %v136
    %245 = vmatpush.msra.mxu0 %v132
    %246 = vmatpush.msra.mxu0 %v128
    %247 = vmatpush.msra.mxu0 %v124
    %248 = vmatpush.msra.mxu0 %v120
    %249 = vmatpush.msra.mxu0 %v116
    %250 = vmatpush.msra.mxu0 %v112
    %251 = vmatmul.f32.gmra.mxu0 %v42
    %v252 = vpop.f32.mrf.mxu0
    %v253 = vadd.f32 %v233, %v252
    %254 = vdwg.mxu0
    %255 = vmatpush.msra.mxu0 %v109
    %256 = vmatpush.msra.mxu0 %v105
    %257 = vmatpush.msra.mxu0 %v101
    %258 = vmatpush.msra.mxu0 %v97
    %259 = vmatpush.msra.mxu0 %v93
    %260 = vmatpush.msra.mxu0 %v89
    %261 = vmatpush.msra.mxu0 %v85
    %262 = vmatpush.msra.mxu0 %v81
    %263 = vmatpush.msra.mxu0 %v77
    %264 = vmatpush.msra.mxu0 %v73
    %265 = vmatpush.msra.mxu0 %v69
    %266 = vmatpush.msra.mxu0 %v65
    %267 = vmatpush.msra.mxu0 %v61
    %268 = vmatpush.msra.mxu0 %v57
    %269 = vmatpush.msra.mxu0 %v53
    %270 = vmatpush.msra.mxu0 %v49
    %271 = vmatmul.f32.gmra.mxu0 %v46
    %v272 = vpop.f32.mrf.mxu0
    %v273 = vadd.f32 %v30, %v272
    %274 = vdwg.mxu0
    %275 = vmatpush.msra.mxu0 %v173
    %276 = vmatpush.msra.mxu0 %v169
    %277 = vmatpush.msra.mxu0 %v165
    %278 = vmatpush.msra.mxu0 %v161
    %279 = vmatpush.msra.mxu0 %v157
    %280 = vmatpush.msra.mxu0 %v153
    %281 = vmatpush.msra.mxu0 %v149
    %282 = vmatpush.msra.mxu0 %v145
    %283 = vmatpush.msra.mxu0 %v141
    %284 = vmatpush.msra.mxu0 %v137
    %285 = vmatpush.msra.mxu0 %v133
    %286 = vmatpush.msra.mxu0 %v129
    %287 = vmatpush.msra.mxu0 %v125
    %288 = vmatpush.msra.mxu0 %v121
    %289 = vmatpush.msra.mxu0 %v117
    %290 = vmatpush.msra.mxu0 %v113
    %291 = vmatmul.f32.gmra.mxu0 %v42
    %v292 = vpop.f32.mrf.mxu0
    %v293 = vadd.f32 %v273, %v292
    %294 = vdwg.mxu0
    %295 = vmatpush.msra.mxu0 %v110
    %296 = vmatpush.msra.mxu0 %v106
    %297 = vmatpush.msra.mxu0 %v102
    %298 = vmatpush.msra.mxu0 %v98
    %299 = vmatpush.msra.mxu0 %v94
    %300 = vmatpush.msra.mxu0 %v90
    %301 = vmatpush.msra.mxu0 %v86
    %302 = vmatpush.msra.mxu0 %v82
    %303 = vmatpush.msra.mxu0 %v78
    %304 = vmatpush.msra.mxu0 %v74
    %305 = vmatpush.msra.mxu0 %v70
    %306 = vmatpush.msra.mxu0 %v66
    %307 = vmatpush.msra.mxu0 %v62
    %308 = vmatpush.msra.mxu0 %v58
    %309 = vmatpush.msra.mxu0 %v54
    %310 = vmatpush.msra.mxu0 %v50
    %311 = vmatmul.f32.gmra.mxu0 %v46
    %v312 = vpop.f32.mrf.mxu0
    %v313 = vadd.f32 %v31, %v312
    %314 = vdwg.mxu0
    %315 = vmatpush.msra.mxu0 %v174
    %316 = vmatpush.msra.mxu0 %v170
    %317 = vmatpush.msra.mxu0 %v166
    %318 = vmatpush.msra.mxu0 %v162
    %319 = vmatpush.msra.mxu0 %v158
    %320 = vmatpush.msra.mxu0 %v154
    %321 = vmatpush.msra.mxu0 %v150
    %322 = vmatpush.msra.mxu0 %v146
    %323 = vmatpush.msra.mxu0 %v142
    %324 = vmatpush.msra.mxu0 %v138
    %325 = vmatpush.msra.mxu0 %v134
    %326 = vmatpush.msra.mxu0 %v130
    %327 = vmatpush.msra.mxu0 %v126
    %328 = vmatpush.msra.mxu0 %v122
    %329 = vmatpush.msra.mxu0 %v118
    %330 = vmatpush.msra.mxu0 %v114
    %331 = vmatmul.f32.gmra.mxu0 %v42
    %v332 = vpop.f32.mrf.mxu0
    %v333 = vadd.f32 %v313, %v332
    %334 = vdwg.mxu0
    %v335 = vxor.u32 %v213, 2147483648
    %v336 = vmul.f32 %v335, 1.442695
    %v337 = vpow.pop %v336
    %v338 = vadd.f32 %v337, 1.0
    %v339 = vrcp.pop %v338
    %v340 = vmul.f32 %v338, %v339
    %v341 = vsub.f32 1.0, %v340
    %v342 = vmul.f32 %v339, %v341
    %v343 = vadd.f32 %v339, %v342
    %vm344 = vweird.f32 %v338
    %vm345 = vweird.f32 %v339
    %vm346 = vmor %vm344, %vm345
    %v347 = vsel %vm346, %v339, %v343
    %v348 = vand.u32 2147483647, %v338
    %vm349 = vcmp.eq.f32.partialorder %v348, 8.507059e+37
    %v350 = vand.u32 %v338, 2147483648
    %v351 = vor.u32 1.1754944e-38, %v350
    %v352 = vsel %vm349, %v351, %v347
    %v353 = vmul.f32 1.0, %v352
    %v354 = vxor.u32 %v253, 2147483648
    %v355 = vmul.f32 %v354, 1.442695
    %v356 = vpow.pop %v355
    %v357 = vadd.f32 %v356, 1.0
    %v358 = vrcp.pop %v357
    %v359 = vmul.f32 %v357, %v358
    %v360 = vsub.f32 1.0, %v359
    %v361 = vmul.f32 %v358, %v360
    %v362 = vadd.f32 %v358, %v361
    %vm363 = vweird.f32 %v357
    %vm364 = vweird.f32 %v358
    %vm365 = vmor %vm363, %vm364
    %v366 = vsel %vm365, %v358, %v362
    %v367 = vand.u32 2147483647, %v357
    %vm368 = vcmp.eq.f32.partialorder %v367, 8.507059e+37
    %v369 = vand.u32 %v357, 2147483648
    %v370 = vor.u32 1.1754944e-38, %v369
    %v371 = vsel %vm368, %v370, %v366
    %v372 = vmul.f32 1.0, %v371
    %v373 = vtanh.pop %v293
    %v374 = vxor.u32 %v333, 2147483648
    %v375 = vmul.f32 %v374, 1.442695
    %v376 = vpow.pop %v375
    %v377 = vadd.f32 %v376, 1.0
    %v378 = vrcp.pop %v377
    %v379 = vmul.f32 %v377, %v378
    %v380 = vsub.f32 1.0, %v379
    %v381 = vmul.f32 %v378, %v380
    %v382 = vadd.f32 %v378, %v381
    %vm383 = vweird.f32 %v377
    %vm384 = vweird.f32 %v378
    %vm385 = vmor %vm383, %vm384
    %v386 = vsel %vm385, %v378, %v382
    %v387 = vand.u32 2147483647, %v377
    %vm388 = vcmp.eq.f32.partialorder %v387, 8.507059e+37
    %v389 = vand.u32 %v377, 2147483648
    %v390 = vor.u32 1.1754944e-38, %v389
    %v391 = vsel %vm388, %v390, %v386
    %v392 = vmul.f32 1.0, %v391
    %v393 = vmul.f32 %v372, %v43
    %v394 = vmul.f32 %v353, %v373
    %v395 = vadd.f32 %v393, %v394
    %v396 = vtanh.pop %v395
    %v397 = vmul.f32 %v392, %v396
    %s398 = scalar_lea.vmem [#allocation2], %s44
    %399 = vst [vmem:[%s398] sm:$0xff] %v397
  $region34: #{lstm1_forward.1} parent=0 // loop_footer
    %s41 = sadd.s32 1, %s37
  $region35: #{lstm1_forward.1} parent=0 // loop_footer_branch
    %36 = sbr.rel target = $region31
  $region36: #{lstm1_forward.1} parent=0 // loop_exit
    _
  %v400 = vld [vmem:[%s4] sm:$0xf]
  %v402 = vperm.slane %v400, 0
  %v403 = vperm.slane %v400, 1
  %v404 = vperm.slane %v400, 2
  %v405 = vperm.slane %v400, 3
  loop: start=0, step=1, limit=8
  $region37: #{lstm1_forward.1} parent=0 // loop_pre_header
    _
  $region38: #{lstm1_forward.1} parent=0 // loop_header
    %s411 = sphi 0, %s415
    %p412 = scmp.ge.s32.totalorder %s411, 8
    %v416 = vphi 0.0, %v771
    %v417 = vphi 0.0, %v769
  $region39: #{lstm1_forward.1} parent=0 // loop_header_branch
    %414 = sbr.rel (%p412) target = $region43
  $region40: #{lstm1_forward.1} parent=0 // loop_body
    %s418 = smul.u32 %s411, 8
    %s419 = scalar_lea.vmem [#allocation2], %s418
    %v420 = vld [vmem:[%s419] sm:$0xff]
    %v421 = vld [vmem:[%s3] sm:$0xff]
    %v422 = vld [vmem:[%s3 + $0x8] sm:$0xff]
    %v423 = vld [vmem:[%s3 + $0x10] sm:$0xff]
    %v424 = vld [vmem:[%s3 + $0x18] sm:$0xff]
    %v425 = vld [vmem:[%s3 + $0x20] sm:$0xff]
    %v426 = vld [vmem:[%s3 + $0x28] sm:$0xff]
    %v427 = vld [vmem:[%s3 + $0x30] sm:$0xff]
    %v428 = vld [vmem:[%s3 + $0x38] sm:$0xff]
    %v429 = vld [vmem:[%s3 + $0x40] sm:$0xff]
    %v430 = vld [vmem:[%s3 + $0x48] sm:$0xff]
    %v431 = vld [vmem:[%s3 + $0x50] sm:$0xff]
    %v432 = vld [vmem:[%s3 + $0x58] sm:$0xff]
    %v433 = vld [vmem:[%s3 + $0x60] sm:$0xff]
    %v434 = vld [vmem:[%s3 + $0x68] sm:$0xff]
    %v435 = vld [vmem:[%s3 + $0x70] sm:$0xff]
    %v436 = vld [vmem:[%s3 + $0x78] sm:$0xff]
    %v437 = vld [vmem:[%s3 + $0x80] sm:$0xff]
    %v438 = vld [vmem:[%s3 + $0x88] sm:$0xff]
    %v439 = vld [vmem:[%s3 + $0x90] sm:$0xff]
    %v440 = vld [vmem:[%s3 + $0x98] sm:$0xff]
    %v441 = vld [vmem:[%s3 + $0xa0] sm:$0xff]
    %v442 = vld [vmem:[%s3 + $0xa8] sm:$0xff]
    %v443 = vld [vmem:[%s3 + $0xb0] sm:$0xff]
    %v444 = vld [vmem:[%s3 + $0xb8] sm:$0xff]
    %v445 = vld [vmem:[%s3 + $0xc0] sm:$0xff]
    %v446 = vld [vmem:[%s3 + $0xc8] sm:$0xff]
    %v447 = vld [vmem:[%s3 + $0xd0] sm:$0xff]
    %v448 = vld [vmem:[%s3 + $0xd8] sm:$0xff]
    %v449 = vld [vmem:[%s3 + $0xe0] sm:$0xff]
    %v450 = vld [vmem:[%s3 + $0xe8] sm:$0xff]
    %v451 = vld [vmem:[%s3 + $0xf0] sm:$0xff]
    %v452 = vld [vmem:[%s3 + $0xf8] sm:$0xff]
    %v453 = vld [vmem:[%s3 + $0x100] sm:$0xff]
    %v454 = vld [vmem:[%s3 + $0x108] sm:$0xff]
    %v455 = vld [vmem:[%s3 + $0x110] sm:$0xff]
    %v456 = vld [vmem:[%s3 + $0x118] sm:$0xff]
    %v457 = vld [vmem:[%s3 + $0x120] sm:$0xff]
    %v458 = vld [vmem:[%s3 + $0x128] sm:$0xff]
    %v459 = vld [vmem:[%s3 + $0x130] sm:$0xff]
    %v460 = vld [vmem:[%s3 + $0x138] sm:$0xff]
    %v461 = vld [vmem:[%s3 + $0x140] sm:$0xff]
    %v462 = vld [vmem:[%s3 + $0x148] sm:$0xff]
    %v463 = vld [vmem:[%s3 + $0x150] sm:$0xff]
    %v464 = vld [vmem:[%s3 + $0x158] sm:$0xff]
    %v465 = vld [vmem:[%s3 + $0x160] sm:$0xff]
    %v466 = vld [vmem:[%s3 + $0x168] sm:$0xff]
    %v467 = vld [vmem:[%s3 + $0x170] sm:$0xff]
    %v468 = vld [vmem:[%s3 + $0x178] sm:$0xff]
    %v469 = vld [vmem:[%s3 + $0x180] sm:$0xff]
    %v470 = vld [vmem:[%s3 + $0x188] sm:$0xff]
    %v471 = vld [vmem:[%s3 + $0x190] sm:$0xff]
    %v472 = vld [vmem:[%s3 + $0x198] sm:$0xff]
    %v473 = vld [vmem:[%s3 + $0x1a0] sm:$0xff]
    %v474 = vld [vmem:[%s3 + $0x1a8] sm:$0xff]
    %v475 = vld [vmem:[%s3 + $0x1b0] sm:$0xff]
    %v476 = vld [vmem:[%s3 + $0x1b8] sm:$0xff]
    %v477 = vld [vmem:[%s3 + $0x1c0] sm:$0xff]
    %v478 = vld [vmem:[%s3 + $0x1c8] sm:$0xff]
    %v479 = vld [vmem:[%s3 + $0x1d0] sm:$0xff]
    %v480 = vld [vmem:[%s3 + $0x1d8] sm:$0xff]
    %v481 = vld [vmem:[%s3 + $0x1e0] sm:$0xff]
    %v482 = vld [vmem:[%s3 + $0x1e8] sm:$0xff]
    %v483 = vld [vmem:[%s3 + $0x1f0] sm:$0xff]
    %v484 = vld [vmem:[%s3 + $0x1f8] sm:$0xff]
    %v485 = vld [vmem:[%s3 + $0x200] sm:$0xff]
    %v486 = vld [vmem:[%s3 + $0x208] sm:$0xff]
    %v487 = vld [vmem:[%s3 + $0x210] sm:$0xff]
    %v488 = vld [vmem:[%s3 + $0x218] sm:$0xff]
    %v489 = vld [vmem:[%s3 + $0x220] sm:$0xff]
    %v490 = vld [vmem:[%s3 + $0x228] sm:$0xff]
    %v491 = vld [vmem:[%s3 + $0x230] sm:$0xff]
    %v492 = vld [vmem:[%s3 + $0x238] sm:$0xff]
    %v493 = vld [vmem:[%s3 + $0x240] sm:$0xff]
    %v494 = vld [vmem:[%s3 + $0x248] sm:$0xff]
    %v495 = vld [vmem:[%s3 + $0x250] sm:$0xff]
    %v496 = vld [vmem:[%s3 + $0x258] sm:$0xff]
    %v497 = vld [vmem:[%s3 + $0x260] sm:$0xff]
    %v498 = vld [vmem:[%s3 + $0x268] sm:$0xff]
    %v499 = vld [vmem:[%s3 + $0x270] sm:$0xff]
    %v500 = vld [vmem:[%s3 + $0x278] sm:$0xff]
    %v501 = vld [vmem:[%s3 + $0x280] sm:$0xff]
    %v502 = vld [vmem:[%s3 + $0x288] sm:$0xff]
    %v503 = vld [vmem:[%s3 + $0x290] sm:$0xff]
    %v504 = vld [vmem:[%s3 + $0x298] sm:$0xff]
    %v505 = vld [vmem:[%s3 + $0x2a0] sm:$0xff]
    %v506 = vld [vmem:[%s3 + $0x2a8] sm:$0xff]
    %v507 = vld [vmem:[%s3 + $0x2b0] sm:$0xff]
    %v508 = vld [vmem:[%s3 + $0x2b8] sm:$0xff]
    %v509 = vld [vmem:[%s3 + $0x2c0] sm:$0xff]
    %v510 = vld [vmem:[%s3 + $0x2c8] sm:$0xff]
    %v511 = vld [vmem:[%s3 + $0x2d0] sm:$0xff]
    %v512 = vld [vmem:[%s3 + $0x2d8] sm:$0xff]
    %v513 = vld [vmem:[%s3 + $0x2e0] sm:$0xff]
    %v514 = vld [vmem:[%s3 + $0x2e8] sm:$0xff]
    %v515 = vld [vmem:[%s3 + $0x2f0] sm:$0xff]
    %v516 = vld [vmem:[%s3 + $0x2f8] sm:$0xff]
    %v517 = vld [vmem:[%s3 + $0x300] sm:$0xff]
    %v518 = vld [vmem:[%s3 + $0x308] sm:$0xff]
    %v519 = vld [vmem:[%s3 + $0x310] sm:$0xff]
    %v520 = vld [vmem:[%s3 + $0x318] sm:$0xff]
    %v521 = vld [vmem:[%s3 + $0x320] sm:$0xff]
    %v522 = vld [vmem:[%s3 + $0x328] sm:$0xff]
    %v523 = vld [vmem:[%s3 + $0x330] sm:$0xff]
    %v524 = vld [vmem:[%s3 + $0x338] sm:$0xff]
    %v525 = vld [vmem:[%s3 + $0x340] sm:$0xff]
    %v526 = vld [vmem:[%s3 + $0x348] sm:$0xff]
    %v527 = vld [vmem:[%s3 + $0x350] sm:$0xff]
    %v528 = vld [vmem:[%s3 + $0x358] sm:$0xff]
    %v529 = vld [vmem:[%s3 + $0x360] sm:$0xff]
    %v530 = vld [vmem:[%s3 + $0x368] sm:$0xff]
    %v531 = vld [vmem:[%s3 + $0x370] sm:$0xff]
    %v532 = vld [vmem:[%s3 + $0x378] sm:$0xff]
    %v533 = vld [vmem:[%s3 + $0x380] sm:$0xff]
    %v534 = vld [vmem:[%s3 + $0x388] sm:$0xff]
    %v535 = vld [vmem:[%s3 + $0x390] sm:$0xff]
    %v536 = vld [vmem:[%s3 + $0x398] sm:$0xff]
    %v537 = vld [vmem:[%s3 + $0x3a0] sm:$0xff]
    %v538 = vld [vmem:[%s3 + $0x3a8] sm:$0xff]
    %v539 = vld [vmem:[%s3 + $0x3b0] sm:$0xff]
    %v540 = vld [vmem:[%s3 + $0x3b8] sm:$0xff]
    %v541 = vld [vmem:[%s3 + $0x3c0] sm:$0xff]
    %v542 = vld [vmem:[%s3 + $0x3c8] sm:$0xff]
    %v543 = vld [vmem:[%s3 + $0x3d0] sm:$0xff]
    %v544 = vld [vmem:[%s3 + $0x3d8] sm:$0xff]
    %v545 = vld [vmem:[%s3 + $0x3e0] sm:$0xff]
    %v546 = vld [vmem:[%s3 + $0x3e8] sm:$0xff]
    %v547 = vld [vmem:[%s3 + $0x3f0] sm:$0xff]
    %v548 = vld [vmem:[%s3 + $0x3f8] sm:$0xff]
    %549 = vmatpush.msra.mxu0 %v481
    %550 = vmatpush.msra.mxu0 %v477
    %551 = vmatpush.msra.mxu0 %v473
    %552 = vmatpush.msra.mxu0 %v469
    %553 = vmatpush.msra.mxu0 %v465
    %554 = vmatpush.msra.mxu0 %v461
    %555 = vmatpush.msra.mxu0 %v457
    %556 = vmatpush.msra.mxu0 %v453
    %557 = vmatpush.msra.mxu0 %v449
    %558 = vmatpush.msra.mxu0 %v445
    %559 = vmatpush.msra.mxu0 %v441
    %560 = vmatpush.msra.mxu0 %v437
    %561 = vmatpush.msra.mxu0 %v433
    %562 = vmatpush.msra.mxu0 %v429
    %563 = vmatpush.msra.mxu0 %v425
    %564 = vmatpush.msra.mxu0 %v421
    %565 = vmatmul.f32.gmra.mxu0 %v420
    %v566 = vpop.f32.mrf.mxu0
    %v567 = vadd.f32 %v402, %v566
    %568 = vdwg.mxu0
    %569 = vmatpush.msra.mxu0 %v545
    %570 = vmatpush.msra.mxu0 %v541
    %571 = vmatpush.msra.mxu0 %v537
    %572 = vmatpush.msra.mxu0 %v533
    %573 = vmatpush.msra.mxu0 %v529
    %574 = vmatpush.msra.mxu0 %v525
    %575 = vmatpush.msra.mxu0 %v521
    %576 = vmatpush.msra.mxu0 %v517
    %577 = vmatpush.msra.mxu0 %v513
    %578 = vmatpush.msra.mxu0 %v509
    %579 = vmatpush.msra.mxu0 %v505
    %580 = vmatpush.msra.mxu0 %v501
    %581 = vmatpush.msra.mxu0 %v497
    %582 = vmatpush.msra.mxu0 %v493
    %583 = vmatpush.msra.mxu0 %v489
    %584 = vmatpush.msra.mxu0 %v485
    %585 = vmatmul.f32.gmra.mxu0 %v416
    %v586 = vpop.f32.mrf.mxu0
    %v587 = vadd.f32 %v567, %v586
    %588 = vdwg.mxu0
    %589 = vmatpush.msra.mxu0 %v482
    %590 = vmatpush.msra.mxu0 %v478
    %591 = vmatpush.msra.mxu0 %v474
    %592 = vmatpush.msra.mxu0 %v470
    %593 = vmatpush.msra.mxu0 %v466
    %594 = vmatpush.msra.mxu0 %v462
    %595 = vmatpush.msra.mxu0 %v458
    %596 = vmatpush.msra.mxu0 %v454
    %597 = vmatpush.msra.mxu0 %v450
    %598 = vmatpush.msra.mxu0 %v446
    %599 = vmatpush.msra.mxu0 %v442
    %600 = vmatpush.msra.mxu0 %v438
    %601 = vmatpush.msra.mxu0 %v434
    %602 = vmatpush.msra.mxu0 %v430
    %603 = vmatpush.msra.mxu0 %v426
    %604 = vmatpush.msra.mxu0 %v422
    %605 = vmatmul.f32.gmra.mxu0 %v420
    %v606 = vpop.f32.mrf.mxu0
    %v607 = vadd.f32 %v403, %v606
    %608 = vdwg.mxu0
    %609 = vmatpush.msra.mxu0 %v546
    %610 = vmatpush.msra.mxu0 %v542
    %611 = vmatpush.msra.mxu0 %v538
    %612 = vmatpush.msra.mxu0 %v534
    %613 = vmatpush.msra.mxu0 %v530
    %614 = vmatpush.msra.mxu0 %v526
    %615 = vmatpush.msra.mxu0 %v522
    %616 = vmatpush.msra.mxu0 %v518
    %617 = vmatpush.msra.mxu0 %v514
    %618 = vmatpush.msra.mxu0 %v510
    %619 = vmatpush.msra.mxu0 %v506
    %620 = vmatpush.msra.mxu0 %v502
    %621 = vmatpush.msra.mxu0 %v498
    %622 = vmatpush.msra.mxu0 %v494
    %623 = vmatpush.msra.mxu0 %v490
    %624 = vmatpush.msra.mxu0 %v486
    %625 = vmatmul.f32.gmra.mxu0 %v416
    %v626 = vpop.f32.mrf.mxu0
    %v627 = vadd.f32 %v607, %v626
    %628 = vdwg.mxu0
    %629 = vmatpush.msra.mxu0 %v483
    %630 = vmatpush.msra.mxu0 %v479
    %631 = vmatpush.msra.mxu0 %v475
    %632 = vmatpush.msra.mxu0 %v471
    %633 = vmatpush.msra.mxu0 %v467
    %634 = vmatpush.msra.mxu0 %v463
    %635 = vmatpush.msra.mxu0 %v459
    %636 = vmatpush.msra.mxu0 %v455
    %637 = vmatpush.msra.mxu0 %v451
    %638 = vmatpush.msra.mxu0 %v447
    %639 = vmatpush.msra.mxu0 %v443
    %640 = vmatpush.msra.mxu0 %v439
    %641 = vmatpush.msra.mxu0 %v435
    %642 = vmatpush.msra.mxu0 %v431
    %643 = vmatpush.msra.mxu0 %v427
    %644 = vmatpush.msra.mxu0 %v423
    %645 = vmatmul.f32.gmra.mxu0 %v420
    %v646 = vpop.f32.mrf.mxu0
    %v647 = vadd.f32 %v404, %v646
    %648 = vdwg.mxu0
    %649 = vmatpush.msra.mxu0 %v547
    %650 = vmatpush.msra.mxu0 %v543
    %651 = vmatpush.msra.mxu0 %v539
    %652 = vmatpush.msra.mxu0 %v535
    %653 = vmatpush.msra.mxu0 %v531
    %654 = vmatpush.msra.mxu0 %v527
    %655 = vmatpush.msra.mxu0 %v523
    %656 = vmatpush.msra.mxu0 %v519
    %657 = vmatpush.msra.mxu0 %v515
    %658 = vmatpush.msra.mxu0 %v511
    %659 = vmatpush.msra.mxu0 %v507
    %660 = vmatpush.msra.mxu0 %v503
    %661 = vmatpush.msra.mxu0 %v499
    %662 = vmatpush.msra.mxu0 %v495
    %663 = vmatpush.msra.mxu0 %v491
    %664 = vmatpush.msra.mxu0 %v487
    %665 = vmatmul.f32.gmra.mxu0 %v416
    %v666 = vpop.f32.mrf.mxu0
    %v667 = vadd.f32 %v647, %v666
    %668 = vdwg.mxu0
    %669 = vmatpush.msra.mxu0 %v484
    %670 = vmatpush.msra.mxu0 %v480
    %671 = vmatpush.msra.mxu0 %v476
    %672 = vmatpush.msra.mxu0 %v472
    %673 = vmatpush.msra.mxu0 %v468
    %674 = vmatpush.msra.mxu0 %v464
    %675 = vmatpush.msra.mxu0 %v460
    %676 = vmatpush.msra.mxu0 %v456
    %677 = vmatpush.msra.mxu0 %v452
    %678 = vmatpush.msra.mxu0 %v448
    %679 = vmatpush.msra.mxu0 %v444
    %680 = vmatpush.msra.mxu0 %v440
    %681 = vmatpush.msra.mxu0 %v436
    %682 = vmatpush.msra.mxu0 %v432
    %683 = vmatpush.msra.mxu0 %v428
    %684 = vmatpush.msra.mxu0 %v424
    %685 = vmatmul.f32.gmra.mxu0 %v420
    %v686 = vpop.f32.mrf.mxu0
    %v687 = vadd.f32 %v405, %v686
    %688 = vdwg.mxu0
    %689 = vmatpush.msra.mxu0 %v548
    %690 = vmatpush.msra.mxu0 %v544
    %691 = vmatpush.msra.mxu0 %v540
    %692 = vmatpush.msra.mxu0 %v536
    %693 = vmatpush.msra.mxu0 %v532
    %694 = vmatpush.msra.mxu0 %v528
    %695 = vmatpush.msra.mxu0 %v524
    %696 = vmatpush.msra.mxu0 %v520
    %697 = vmatpush.msra.mxu0 %v516
    %698 = vmatpush.msra.mxu0 %v512
    %699 = vmatpush.msra.mxu0 %v508
    %700 = vmatpush.msra.mxu0 %v504
    %701 = vmatpush.msra.mxu0 %v500
    %702 = vmatpush.msra.mxu0 %v496
    %703 = vmatpush.msra.mxu0 %v492
    %704 = vmatpush.msra.mxu0 %v488
    %705 = vmatmul.f32.gmra.mxu0 %v416
    %v706 = vpop.f32.mrf.mxu0
    %v707 = vadd.f32 %v687, %v706
    %708 = vdwg.mxu0
    %v709 = vxor.u32 %v587, 2147483648
    %v710 = vmul.f32 %v709, 1.442695
    %v711 = vpow.pop %v710
    %v712 = vadd.f32 %v711, 1.0
    %v713 = vrcp.pop %v712
    %v714 = vmul.f32 %v712, %v713
    %v715 = vsub.f32 1.0, %v714
    %v716 = vmul.f32 %v713, %v715
    %v717 = vadd.f32 %v713, %v716
    %vm718 = vweird.f32 %v712
    %vm719 = vweird.f32 %v713
    %vm720 = vmor %vm718, %vm719
    %v721 = vsel %vm720, %v713, %v717
    %v722 = vand.u32 2147483647, %v712
    %vm723 = vcmp.eq.f32.partialorder %v722, 8.507059e+37
    %v724 = vand.u32 %v712, 2147483648
    %v725 = vor.u32 1.1754944e-38, %v724
    %v726 = vsel %vm723, %v725, %v721
    %v727 = vmul.f32 1.0, %v726
    %v728 = vxor.u32 %v627, 2147483648
    %v729 = vmul.f32 %v728, 1.442695
    %v730 = vpow.pop %v729
    %v731 = vadd.f32 %v730, 1.0
    %v732 = vrcp.pop %v731
    %v733 = vmul.f32 %v731, %v732
    %v734 = vsub.f32 1.0, %v733
    %v735 = vmul.f32 %v732, %v734
    %v736 = vadd.f32 %v732, %v735
    %vm737 = vweird.f32 %v731
    %vm738 = vweird.f32 %v732
    %vm739 = vmor %vm737, %vm738
    %v740 = vsel %vm739, %v732, %v736
    %v741 = vand.u32 2147483647, %v731
    %vm742 = vcmp.eq.f32.partialorder %v741, 8.507059e+37
    %v743 = vand.u32 %v731, 2147483648
    %v744 = vor.u32 1.1754944e-38, %v743
    %v745 = vsel %vm742, %v744, %v740
    %v746 = vmul.f32 1.0, %v745
    %v747 = vtanh.pop %v667
    %v748 = vxor.u32 %v707, 2147483648
    %v749 = vmul.f32 %v748, 1.442695
    %v750 = vpow.pop %v749
    %v751 = vadd.f32 %v750, 1.0
    %v752 = vrcp.pop %v751
    %v753 = vmul.f32 %v751, %v752
    %v754 = vsub.f32 1.0, %v753
    %v755 = vmul.f32 %v752, %v754
    %v756 = vadd.f32 %v752, %v755
    %vm757 = vweird.f32 %v751
    %vm758 = vweird.f32 %v752
    %vm759 = vmor %vm757, %vm758
    %v760 = vsel %vm759, %v752, %v756
    %v761 = vand.u32 2147483647, %v751
    %vm762 = vcmp.eq.f32.partialorder %v761, 8.507059e+37
    %v763 = vand.u32 %v751, 2147483648
    %v764 = vor.u32 1.1754944e-38, %v763
    %v765 = vsel %vm762, %v764, %v760
    %v766 = vmul.f32 1.0, %v765
    %v767 = vmul.f32 %v746, %v417
    %v768 = vmul.f32 %v727, %v747
    %v769 = vadd.f32 %v767, %v768
    %v770 = vtanh.pop %v769
    %v771 = vmul.f32 %v766, %v770
  $region41: #{lstm1_forward.1} parent=0 // loop_footer
    %s415 = sadd.s32 1, %s411
  $region42: #{lstm1_forward.1} parent=0 // loop_footer_branch
    %410 = sbr.rel target = $region38
  $region43: #{lstm1_forward.1} parent=0 // loop_exit
    _
  %v772 = vld [vmem:[%s5] sm:$0xff]
  %v773 = vld [vmem:[%s5 + $0x8] sm:$0xff]
  %v774 = vld [vmem:[%s5 + $0x10] sm:$0xff]
  %v775 = vld [vmem:[%s5 + $0x18] sm:$0xff]
  %v776 = vld [vmem:[%s5 + $0x20] sm:$0xff]
  %v777 = vld [vmem:[%s5 + $0x28] sm:$0xff]
  %v778 = vld [vmem:[%s5 + $0x30] sm:$0xff]
  %v779 = vld [vmem:[%s5 + $0x38] sm:$0xff]
  %v780 = vld [vmem:[%s5 + $0x40] sm:$0xff]
  %v781 = vld [vmem:[%s5 + $0x48] sm:$0xff]
  %v782 = vld [vmem:[%s5 + $0x50] sm:$0xff]
  %v783 = vld [vmem:[%s5 + $0x58] sm:$0xff]
  %v784 = vld [vmem:[%s5 + $0x60] sm:$0xff]
  %v785 = vld [vmem:[%s5 + $0x68] sm:$0xff]
  %v786 = vld [vmem:[%s5 + $0x70] sm:$0xff]
  %v787 = vld [vmem:[%s5 + $0x78] sm:$0xff]
  %v788 = vld [vmem:[%s6] sm:$0x1]
  %v790 = vperm.slane %v788, 0
  %792 = vmatpush.msra.mxu0 %v787
  %793 = vmatpush.msra.mxu0 %v786
  %794 = vmatpush.msra.mxu0 %v785
  %795 = vmatpush.msra.mxu0 %v784
  %796 = vmatpush.msra.mxu0 %v783
  %797 = vmatpush.msra.mxu0 %v782
  %798 = vmatpush.msra.mxu0 %v781
  %799 = vmatpush.msra.mxu0 %v780
  %800 = vmatpush.msra.mxu0 %v779
  %801 = vmatpush.msra.mxu0 %v778
  %802 = vmatpush.msra.mxu0 %v777
  %803 = vmatpush.msra.mxu0 %v776
  %804 = vmatpush.msra.mxu0 %v775
  %805 = vmatpush.msra.mxu0 %v774
  %806 = vmatpush.msra.mxu0 %v773
  %807 = vmatpush.msra.mxu0 %v772
  %808 = vmatmul.f32.gmra.mxu0 %v416
  %v809 = vpop.f32.mrf.mxu0
  %v810 = vadd.f32 %v790, %v809
  %811 = vdwg.mxu0
  %812 = vst [vmem:[%s7] sm:$0xff] %v810
  // Predicated region
  $region44: #{lstm1_forward.1} parent=0 // pred_check
    _
  $region45: #{lstm1_forward.1} parent=0 // pred_check_branch
    %814 = sbr.rel (0) target = $region47
  $region46: #{lstm1_forward.1} parent=0 // pred_region
    _
  $region47: #{lstm1_forward.1} parent=0 // pred_fallthru
    _
  // Predicated region
  $region48: #{lstm1_forward.1} parent=0 // pred_check
    _
  $region49: #{lstm1_forward.1} parent=0 // pred_check_branch
    %816 = sbr.rel (0) target = $region51
  $region50: #{lstm1_forward.1} parent=0 // pred_region
    _
  $region51: #{lstm1_forward.1} parent=0 // pred_fallthru
    _

</llo_original>
